<compile_context>
chip_gen: v6e
topology: v6e:2x2x1
jax: 0.10.0
libtpu: 0.0.40
codegen_flags: <defaults>
</compile_context>

<pallas_src>
import jax
import jax.numpy as jnp
from jax.experimental import pallas as pl
from jax.experimental.pallas import tpu as pltpu

H1 = 128
H2 = 256


def _round_up(n, m):
    return ((n + m - 1) // m) * m


def _critic_kernel(xT_ref, w1_ref, b1_ref, w2_ref, b2_ref, w3_ref, b3_ref, out_ref):
    # xT : (S_pad, TB)            w1 : (128, S_pad)   b1 : (128, 1)
    # w2 : (256, 128) [bf16/f32]  b2 : (256, 1)       w3 : (256, 1)
    # b3 : (1, 1) SMEM scalar     out: (1, TB)  -- lane-dense row (batch on lanes)
    xT = xT_ref[...]

    # ---- layer 1: (128, S_pad) @ (S_pad, TB) -> (128, TB).  K is tiny but the MXU is
    # otherwise idle here, so this costs only extended-slot pushes (no XLU traffic).
    h1 = jnp.dot(w1_ref[...], xT, preferred_element_type=jnp.float32) + b1_ref[...]
    h1 = jnp.maximum(h1, 0.0)                                   # ReLU (f32 on VPU)

    # ---- layer 2: the big matmul, (256, 128) @ (128, TB) -> (256, TB) on the MXU.
    # w2 arrives already cast (bf16 by default) from the wrapper; only h1 is cast here.
    h2 = jnp.dot(w2_ref[...], h1.astype(w2_ref.dtype),
                 preferred_element_type=jnp.float32) + b2_ref[...]
    h2 = jnp.maximum(h2, 0.0)                                   # ReLU (f32)

    # ---- layer 3: per-sublane scale + reduction over the 256-sublane axis.
    # (31 VALU vreg adds per lane column + a final sublane fold) -> (1, TB), lane-dense.
    v = jnp.sum(h2 * w3_ref[...], axis=0, keepdims=True) + b3_ref[0, 0]
    out_ref[...] = v.astype(out_ref.dtype)


def critic_forward(x, params, *, tile_b=1024, use_bf16_matmul=True, vmem_limit_bytes=None):
    """x: (B, state_size) f32 -> value: (B, 1) f32 (matches Critic.forward).

    params are in native PyTorch layouts:
      w1 (128, S), b1 (128,), w2 (256, 128), b2 (256,), w3 (1, 256), b3 (1,)
    """
    w1, b1, w2, b2, w3, b3 = params
    B, S = x.shape
    h1 = w1.shape[0]
    h2 = w2.shape[0]

    # ---- batch tiling (batch lives on the lane axis, so tiles are multiples of 128).
    b128 = _round_up(B, 128)
    tb = max(128, min(_round_up(tile_b, 128), b128))
    if b128 >= 256:
        # Guarantee >= 2 tiles so both v7x TensorCores get work (no-op on v5e/v6e).
        tb = min(tb, _round_up(pl.cdiv(b128, 2), 128))
    b_pad = _round_up(B, tb)
    num_tiles = b_pad // tb

    # ---- transposed / padded operands.  S is padded to a full sublane group (8) with
    # zeros on both x and w1, so the extra contraction terms contribute exactly 0.
    s_pad = _round_up(S, 8)
    xT = jnp.zeros((s_pad, b_pad), x.dtype).at[:S, :B].set(x.T)
    w1p = jnp.zeros((h1, s_pad), w1.dtype).at[:, :S].set(w1)
    b1c = b1.reshape(h1, 1)
    w2m = w2.astype(jnp.bfloat16) if use_bf16_matmul else w2     # cast hoisted out of kernel
    b2c = b2.reshape(h2, 1)
    w3c = w3.reshape(h2, 1)                                      # (256, 1) column
    b3s = b3.reshape(1, 1)                                       # scalar -> SMEM

    resident = dict(pipeline_mode=pl.Buffered(1))                # grid-invariant operands

    compiler_kwargs = dict(dimension_semantics=("parallel",))
    if vmem_limit_bytes is not None:
        compiler_kwargs["vmem_limit_bytes"] = vmem_limit_bytes

    out = pl.pallas_call(
        _critic_kernel,
        out_shape=jax.ShapeDtypeStruct((1, b_pad), jnp.float32),
        grid=(num_tiles,),
        in_specs=[
            pl.BlockSpec((s_pad, tb), lambda i: (0, i)),             # xT: streamed, lane-dense
            pl.BlockSpec((h1, s_pad), lambda i: (0, 0), **resident),  # w1
            pl.BlockSpec((h1, 1), lambda i: (0, 0), **resident),      # b1
            pl.BlockSpec((h2, h1), lambda i: (0, 0), **resident),     # w2 (bf16 by default)
            pl.BlockSpec((h2, 1), lambda i: (0, 0), **resident),      # b2
            pl.BlockSpec((h2, 1), lambda i: (0, 0), **resident),      # w3 column
            pl.BlockSpec(memory_space=pltpu.MemorySpace.SMEM),        # b3 scalar
        ],
        out_specs=pl.BlockSpec((1, tb), lambda i: (0, i)),            # lane-dense output row
        compiler_params=pltpu.CompilerParams(**compiler_kwargs),
    )(xT, w1p, b1c, w2m, b2c, w3c, b3s)

    return out[0, :B].reshape(B, 1)


def init_critic_params(key, state_size):
    """PyTorch nn.Linear default init: U(-1/sqrt(fan_in), +1/sqrt(fan_in)), native layouts."""
    ks = jax.random.split(key, 6)

    def linear(kw, kb, fan_in, fan_out):
        bound = float(fan_in) ** -0.5
        w = jax.random.uniform(kw, (fan_out, fan_in), jnp.float32, -bound, bound)
        b = jax.random.uniform(kb, (fan_out,), jnp.float32, -bound, bound)
        return w, b

    w1, b1 = linear(ks[0], ks[1], state_size, H1)
    w2, b2 = linear(ks[2], ks[3], H1, H2)
    w3, b3 = linear(ks[4], ks[5], H2, 1)
    return (w1, b1, w2, b2, w3, b3)


def critic_reference(x, params):
    w1, b1, w2, b2, w3, b3 = params
    a1 = jnp.maximum(x @ w1.T + b1, 0.0)
    a2 = jnp.maximum(a1 @ w2.T + b2, 0.0)
    return a2 @ w3.T + b3


if __name__ == "__main__":
    key = jax.random.PRNGKey(0)
    k_param, k_s1, k_s2 = jax.random.split(key, 3)

    state_size = 4  # e.g. CartPole observation dim
    params = init_critic_params(k_param, state_size)

    # Small "module-sized" batch, exact f32 path (tight tolerance).
    x1 = jax.random.normal(k_s1, (8, state_size), jnp.float32)
    v1 = jax.block_until_ready(critic_forward(x1, params, use_bf16_matmul=False))
    r1 = critic_reference(x1, params)
    assert v1.shape == (8, 1)
    assert jnp.allclose(v1, r1, atol=1e-5, rtol=1e-5), "mismatch vs reference (B=8, f32)"

    # Larger, non-multiple batch: exercises padded tail + >=2 batch tiles, default bf16 MXU
    # path (documented accuracy trade-off -> relaxed tolerance).
    x2 = jax.random.normal(k_s2, (300, state_size), jnp.float32)
    v2 = jax.block_until_ready(critic_forward(x2, params))
    r2 = critic_reference(x2, params)
    assert v2.shape == (300, 1)
    assert jnp.allclose(v2, r2, atol=5e-2, rtol=5e-2), "mismatch vs reference (B=300, bf16)"

    # Same batch through the f32 path must match tightly.
    v2f = jax.block_until_ready(critic_forward(x2, params, use_bf16_matmul=False))
    assert jnp.allclose(v2f, r2, atol=1e-5, rtol=1e-5), "mismatch vs reference (B=300, f32)"

    print("KERNEL_OK")
</pallas_src>

<mosaic_0001>
module attributes {stable_mosaic.version = 11 : i64} {
  func.func @_critic_kernel(%arg0: i32, %arg1: memref<8x128xf32, #tpu.memory_space<vmem>>, %arg2: memref<128x8xf32, #tpu.memory_space<vmem>>, %arg3: memref<128x1xf32, #tpu.memory_space<vmem>>, %arg4: memref<256x128xf32, #tpu.memory_space<vmem>>, %arg5: memref<256x1xf32, #tpu.memory_space<vmem>>, %arg6: memref<256x1xf32, #tpu.memory_space<vmem>>, %arg7: memref<1x1xf32, #tpu.memory_space<smem>>, %arg8: memref<1x128xf32, #tpu.memory_space<vmem>>) attributes {dimension_semantics = [#tpu.dimension_semantics<parallel>], iteration_bounds = array<i64: 1>, scalar_prefetch = 0 : i64, scratch_operands = 0 : i64, tpu.core_type = #tpu.core_type<tc>, window_params = [{transform_indices = @transform_0, window_bounds = array<i64: 8, 128>}, {pipeline_mode = #tpu.pipeline_mode<synchronous>, transform_indices = @transform_1, window_bounds = array<i64: 128, 8>}, {pipeline_mode = #tpu.pipeline_mode<synchronous>, transform_indices = @transform_2, window_bounds = array<i64: 128, 1>}, {pipeline_mode = #tpu.pipeline_mode<synchronous>, transform_indices = @transform_3, window_bounds = array<i64: 256, 128>}, {pipeline_mode = #tpu.pipeline_mode<synchronous>, transform_indices = @transform_4, window_bounds = array<i64: 256, 1>}, {pipeline_mode = #tpu.pipeline_mode<synchronous>, transform_indices = @transform_5, window_bounds = array<i64: 256, 1>}, {transform_indices = @transform_6, window_bounds = array<i64: 1, 1>}, {transform_indices = @transform_7, window_bounds = array<i64: 1, 128>}]} {
    %c0 = arith.constant 0 : index
    %c0_0 = arith.constant 0 : index
    %0 = vector.load %arg1[%c0, %c0_0] : memref<8x128xf32, #tpu.memory_space<vmem>>, vector<8x128xf32>
    %c0_1 = arith.constant 0 : index
    %c0_2 = arith.constant 0 : index
    %1 = vector.load %arg2[%c0_1, %c0_2] : memref<128x8xf32, #tpu.memory_space<vmem>>, vector<128x8xf32>
    %cst = arith.constant dense<0.000000e+00> : vector<128x128xf32>
    %2 = tpu.matmul %1, %0, %cst {dimension_numbers = #tpu.dot_dimension_numbers<[1], [0], [0], [1], [0, 0, 1, 1], [], []>} : vector<128x8xf32>, vector<8x128xf32>, vector<128x128xf32> -> vector<128x128xf32>
    %c0_3 = arith.constant 0 : index
    %c0_4 = arith.constant 0 : index
    %3 = vector.load %arg3[%c0_3, %c0_4] : memref<128x1xf32, #tpu.memory_space<vmem>>, vector<128x1xf32>
    %4 = vector.broadcast %3 : vector<128x1xf32> to vector<128x128xf32>
    %5 = arith.addf %2, %4 : vector<128x128xf32>
    %cst_5 = arith.constant 0.000000e+00 : f32
    %6 = vector.broadcast %cst_5 : f32 to vector<128x128xf32>
    %7 = arith.maximumf %5, %6 : vector<128x128xf32>
    %c0_6 = arith.constant 0 : index
    %c0_7 = arith.constant 0 : index
    %8 = vector.load %arg4[%c0_6, %c0_7] : memref<256x128xf32, #tpu.memory_space<vmem>>, vector<256x128xf32>
    %cst_8 = arith.constant dense<0.000000e+00> : vector<256x128xf32>
    %9 = tpu.matmul %8, %7, %cst_8 {dimension_numbers = #tpu.dot_dimension_numbers<[1], [0], [0], [1], [0, 0, 1, 1], [], []>} : vector<256x128xf32>, vector<128x128xf32>, vector<256x128xf32> -> vector<256x128xf32>
    %c0_9 = arith.constant 0 : index
    %c0_10 = arith.constant 0 : index
    %10 = vector.load %arg5[%c0_9, %c0_10] : memref<256x1xf32, #tpu.memory_space<vmem>>, vector<256x1xf32>
    %11 = vector.broadcast %10 : vector<256x1xf32> to vector<256x128xf32>
    %12 = arith.addf %9, %11 : vector<256x128xf32>
    %cst_11 = arith.constant 0.000000e+00 : f32
    %13 = vector.broadcast %cst_11 : f32 to vector<256x128xf32>
    %14 = arith.maximumf %12, %13 : vector<256x128xf32>
    %c0_12 = arith.constant 0 : index
    %c0_13 = arith.constant 0 : index
    %15 = vector.load %arg6[%c0_12, %c0_13] : memref<256x1xf32, #tpu.memory_space<vmem>>, vector<256x1xf32>
    %16 = vector.broadcast %15 : vector<256x1xf32> to vector<256x128xf32>
    %17 = arith.mulf %14, %16 : vector<256x128xf32>
    %cst_14 = arith.constant dense<0.000000e+00> : vector<128xf32>
    %18 = vector.multi_reduction <add>, %17, %cst_14 [0] : vector<256x128xf32> to vector<128xf32>
    %19 = vector.shape_cast %18 : vector<128xf32> to vector<1x128xf32>
    %c0_15 = arith.constant 0 : index
    %c0_16 = arith.constant 0 : index
    %20 = memref.load %arg7[%c0_15, %c0_16] : memref<1x1xf32, #tpu.memory_space<smem>>
    %21 = vector.broadcast %20 : f32 to vector<1x128xf32>
    %22 = arith.addf %19, %21 : vector<1x128xf32>
    %c0_17 = arith.constant 0 : index
    %c0_18 = arith.constant 0 : index
    %23 = vector.load %arg8[%c0_17, %c0_18] : memref<1x128xf32, #tpu.memory_space<vmem>>, vector<1x128xf32>
    tpu.vector_store %arg8[%c0_17, %c0_18], %22 {strides = array<i32>} : memref<1x128xf32, #tpu.memory_space<vmem>>, vector<1x128xf32>,
    return
  }
  func.func @transform_0(%arg0: i32) -> (i32, i32) {
    %c0_i32 = arith.constant 0 : i32
    %c0_i32_0 = arith.constant 0 : i32
    return %c0_i32, %arg0 : i32, i32
  }
  func.func @transform_1(%arg0: i32) -> (i32, i32) {
    %c0_i32 = arith.constant 0 : i32
    %c0_i32_0 = arith.constant 0 : i32
    %c0_i32_1 = arith.constant 0 : i32
    return %c0_i32, %c0_i32_0 : i32, i32
  }
  func.func @transform_2(%arg0: i32) -> (i32, i32) {
    %c0_i32 = arith.constant 0 : i32
    %c0_i32_0 = arith.constant 0 : i32
    %c0_i32_1 = arith.constant 0 : i32
    return %c0_i32, %c0_i32_0 : i32, i32
  }
  func.func @transform_3(%arg0: i32) -> (i32, i32) {
    %c0_i32 = arith.constant 0 : i32
    %c0_i32_0 = arith.constant 0 : i32
    %c0_i32_1 = arith.constant 0 : i32
    return %c0_i32, %c0_i32_0 : i32, i32
  }
  func.func @transform_4(%arg0: i32) -> (i32, i32) {
    %c0_i32 = arith.constant 0 : i32
    %c0_i32_0 = arith.constant 0 : i32
    %c0_i32_1 = arith.constant 0 : i32
    return %c0_i32, %c0_i32_0 : i32, i32
  }
  func.func @transform_5(%arg0: i32) -> (i32, i32) {
    %c0_i32 = arith.constant 0 : i32
    %c0_i32_0 = arith.constant 0 : i32
    %c0_i32_1 = arith.constant 0 : i32
    return %c0_i32, %c0_i32_0 : i32, i32
  }
  func.func @transform_6(%arg0: i32) -> (i32, i32) {
    %c0_i32 = arith.constant 0 : i32
    %c0_i32_0 = arith.constant 0 : i32
    %c0_i32_1 = arith.constant 0 : i32
    return %c0_i32, %c0_i32_0 : i32, i32
  }
  func.func @transform_7(%arg0: i32) -> (i32, i32) {
    %c0_i32 = arith.constant 0 : i32
    %c0_i32_0 = arith.constant 0 : i32
    return %c0_i32, %arg0 : i32, i32
  }
}

</mosaic_0001>

<llo_original>
// kernel: tpu_custom_call.1
$region0: #{tpu_custom_call.1}
  #allocation0 [shape = 'u32[]', space=smem, size = 0x4, offset = 0x4, fixed_abs, tag = 'smem constant byte address 0x4 - core index']
  #allocation1 [shape = 'u32[144,128]{1,0:T(1,128)}', space=vmem, size = 0x12000, scoped, tag = 'internal scratch']
  #allocation2 [shape = 'f32[1,1]{1,0:T(1,128)S(6)}', space=smem, size = 0x200, scoped, tag = 'scoped memory for tpu_custom_call.1']
  %s0 = inlined_call_operand.vmem [shape: f32[8,128], index: 0, kind: input, shape index: {}]
  %s1 = inlined_call_operand.vmem [shape: f32[128,8], index: 1, kind: input, shape index: {}]
  %s2 = inlined_call_operand.vmem [shape: f32[128,1], index: 2, kind: input, shape index: {}]
  %s3 = inlined_call_operand.vmem [shape: f32[256,128], index: 3, kind: input, shape index: {}]
  %s4 = inlined_call_operand.vmem [shape: f32[256,1], index: 4, kind: input, shape index: {}]
  %s5 = inlined_call_operand.vmem [shape: f32[256,1], index: 5, kind: input, shape index: {}]
  %s6 = inlined_call_operand.<no memory space> [shape: f32[1,1], index: 6, kind: input, shape index: {}]
  %s7 = inlined_call_operand.hbm [shape: f32[1,128], index: 7, kind: output, shape index: {}]
  %s8 = sld [smem:[#allocation0]]
  $region38: #{tpu_custom_call.1} parent=0
    _
  %s10 = ssub.s32 1, %s8
  %s11 = scalar_select 0, %s10, %s8
  %12 = sst [smem:[#allocation2]] %s6
  $region1: #{tpu_custom_call.1} parent=0
    #allocation3 [shape = 'u8[512]{0}', space=vmem, size = 0x400, scoped, tag = 'output window, operand 0, single buffered']
    #allocation4 [shape = 's32[1]{0}', space=sflag, size = 0x4, scoped, tag = 'scoped memory for tpu_custom_call.1']
    %13 = vsyncpa [#allocation4], 0
    // Predicated region
    $region2: #{tpu_custom_call.1} parent=1 // pred_check
      _
    $region3: #{tpu_custom_call.1} parent=1 // pred_check_branch
      %15 = sbr.rel (0) target = $region5
    $region4: #{tpu_custom_call.1} parent=1 // pred_region
      _
    $region5: #{tpu_custom_call.1} parent=1 // pred_fallthru
      _
    // Predicated region
    $region6: #{tpu_custom_call.1} parent=1 // pred_check
      _
    $region7: #{tpu_custom_call.1} parent=1 // pred_check_branch
      %17 = sbr.rel (0) target = $region9
    $region8: #{tpu_custom_call.1} parent=1 // pred_region
      _
    $region9: #{tpu_custom_call.1} parent=1 // pred_fallthru
      _
    // Predicated region
    $region10: #{tpu_custom_call.1} parent=1 // pred_check
      _
    $region11: #{tpu_custom_call.1} parent=1 // pred_check_branch
      %19 = sbr.rel (0) target = $region13
    $region12: #{tpu_custom_call.1} parent=1 // pred_region
      _
    $region13: #{tpu_custom_call.1} parent=1 // pred_fallthru
      _
    // Predicated region
    $region14: #{tpu_custom_call.1} parent=1 // pred_check
      _
    $region15: #{tpu_custom_call.1} parent=1 // pred_check_branch
      %21 = sbr.rel (0) target = $region17
    $region16: #{tpu_custom_call.1} parent=1 // pred_region
      _
    $region17: #{tpu_custom_call.1} parent=1 // pred_fallthru
      _
    // Predicated region
    $region18: #{tpu_custom_call.1} parent=1 // pred_check
      _
    $region19: #{tpu_custom_call.1} parent=1 // pred_check_branch
      %23 = sbr.rel (0) target = $region21
    $region20: #{tpu_custom_call.1} parent=1 // pred_region
      _
    $region21: #{tpu_custom_call.1} parent=1 // pred_fallthru
      _
    // Predicated region
    $region22: #{tpu_custom_call.1} parent=1 // pred_check
      _
    $region23: #{tpu_custom_call.1} parent=1 // pred_check_branch
      %25 = sbr.rel (0) target = $region25
    $region24: #{tpu_custom_call.1} parent=1 // pred_region
      _
    $region25: #{tpu_custom_call.1} parent=1 // pred_fallthru
      _
    // Predicated region
    $region26: #{tpu_custom_call.1} parent=1 // pred_check
      _
    $region27: #{tpu_custom_call.1} parent=1 // pred_check_branch
      %27 = sbr.rel (0) target = $region29
    $region28: #{tpu_custom_call.1} parent=1 // pred_region
      _
    $region29: #{tpu_custom_call.1} parent=1 // pred_fallthru
      _
    %v28 = vld [vmem:[%s0] sm:$0xff]
    %v29 = vld [vmem:[%s1] sm:$0xff]
    %v30 = vld [vmem:[%s1 + $0x8] sm:$0xff]
    %v31 = vld [vmem:[%s1 + $0x10] sm:$0xff]
    %v32 = vld [vmem:[%s1 + $0x18] sm:$0xff]
    %v33 = vld [vmem:[%s1 + $0x20] sm:$0xff]
    %v34 = vld [vmem:[%s1 + $0x28] sm:$0xff]
    %v35 = vld [vmem:[%s1 + $0x30] sm:$0xff]
    %v36 = vld [vmem:[%s1 + $0x38] sm:$0xff]
    %v37 = vld [vmem:[%s1 + $0x40] sm:$0xff]
    %v38 = vld [vmem:[%s1 + $0x48] sm:$0xff]
    %v39 = vld [vmem:[%s1 + $0x50] sm:$0xff]
    %v40 = vld [vmem:[%s1 + $0x58] sm:$0xff]
    %v41 = vld [vmem:[%s1 + $0x60] sm:$0xff]
    %v42 = vld [vmem:[%s1 + $0x68] sm:$0xff]
    %v43 = vld [vmem:[%s1 + $0x70] sm:$0xff]
    %v44 = vld [vmem:[%s1 + $0x78] sm:$0xff]
    %v45 = vld [vmem:[%s2] sm:$0xff]
    %v46 = vld [vmem:[%s2 + $0x8] sm:$0xff]
    %v47 = vld [vmem:[%s2 + $0x10] sm:$0xff]
    %v48 = vld [vmem:[%s2 + $0x18] sm:$0xff]
    %v49 = vld [vmem:[%s2 + $0x20] sm:$0xff]
    %v50 = vld [vmem:[%s2 + $0x28] sm:$0xff]
    %v51 = vld [vmem:[%s2 + $0x30] sm:$0xff]
    %v52 = vld [vmem:[%s2 + $0x38] sm:$0xff]
    %v53 = vld [vmem:[%s2 + $0x40] sm:$0xff]
    %v54 = vld [vmem:[%s2 + $0x48] sm:$0xff]
    %v55 = vld [vmem:[%s2 + $0x50] sm:$0xff]
    %v56 = vld [vmem:[%s2 + $0x58] sm:$0xff]
    %v57 = vld [vmem:[%s2 + $0x60] sm:$0xff]
    %v58 = vld [vmem:[%s2 + $0x68] sm:$0xff]
    %v59 = vld [vmem:[%s2 + $0x70] sm:$0xff]
    %v60 = vld [vmem:[%s2 + $0x78] sm:$0xff]
    %62 = vset.pattern.permute.xlu0 0
    %63 = vperm.xlu0 %62, %v45
    %v64 = vpop.permute.xlu0 %63
    %67 = vset.pattern.permute.xlu0 0
    %68 = vperm.xlu0 %67, %v46
    %v69 = vpop.permute.xlu0 %68
    %72 = vset.pattern.permute.xlu0 0
    %73 = vperm.xlu0 %72, %v47
    %v74 = vpop.permute.xlu0 %73
    %77 = vset.pattern.permute.xlu0 0
    %78 = vperm.xlu0 %77, %v48
    %v79 = vpop.permute.xlu0 %78
    %82 = vset.pattern.permute.xlu0 0
    %83 = vperm.xlu0 %82, %v49
    %v84 = vpop.permute.xlu0 %83
    %87 = vset.pattern.permute.xlu0 0
    %88 = vperm.xlu0 %87, %v50
    %v89 = vpop.permute.xlu0 %88
    %92 = vset.pattern.permute.xlu0 0
    %93 = vperm.xlu0 %92, %v51
    %v94 = vpop.permute.xlu0 %93
    %97 = vset.pattern.permute.xlu0 0
    %98 = vperm.xlu0 %97, %v52
    %v99 = vpop.permute.xlu0 %98
    %102 = vset.pattern.permute.xlu0 0
    %103 = vperm.xlu0 %102, %v53
    %v104 = vpop.permute.xlu0 %103
    %107 = vset.pattern.permute.xlu0 0
    %108 = vperm.xlu0 %107, %v54
    %v109 = vpop.permute.xlu0 %108
    %112 = vset.pattern.permute.xlu0 0
    %113 = vperm.xlu0 %112, %v55
    %v114 = vpop.permute.xlu0 %113
    %117 = vset.pattern.permute.xlu0 0
    %118 = vperm.xlu0 %117, %v56
    %v119 = vpop.permute.xlu0 %118
    %122 = vset.pattern.permute.xlu0 0
    %123 = vperm.xlu0 %122, %v57
    %v124 = vpop.permute.xlu0 %123
    %127 = vset.pattern.permute.xlu0 0
    %128 = vperm.xlu0 %127, %v58
    %v129 = vpop.permute.xlu0 %128
    %132 = vset.pattern.permute.xlu0 0
    %133 = vperm.xlu0 %132, %v59
    %v134 = vpop.permute.xlu0 %133
    %137 = vset.pattern.permute.xlu0 0
    %138 = vperm.xlu0 %137, %v60
    %v139 = vpop.permute.xlu0 %138
    %vm141 = vcmask 64512
    %v143 = vsel %vm141, %v29, 0
    %v146 = vsel %vm141, %v30, 0
    %v149 = vsel %vm141, %v31, 0
    %v152 = vsel %vm141, %v32, 0
    %v155 = vsel %vm141, %v33, 0
    %v158 = vsel %vm141, %v34, 0
    %v161 = vsel %vm141, %v35, 0
    %v164 = vsel %vm141, %v36, 0
    %v167 = vsel %vm141, %v37, 0
    %v170 = vsel %vm141, %v38, 0
    %v173 = vsel %vm141, %v39, 0
    %v176 = vsel %vm141, %v40, 0
    %v179 = vsel %vm141, %v41, 0
    %v182 = vsel %vm141, %v42, 0
    %v185 = vsel %vm141, %v43, 0
    %v188 = vsel %vm141, %v44, 0
    %190 = vmatprep.subr.mxu0 0.0
    %191 = vmatpush1.msra.mxu0 0.0
    %192 = vmatprep.subr.mxu0 0.0
    %193 = vmatpush1.msra.mxu0 0.0
    %194 = vmatprep.subr.mxu0 0.0
    %195 = vmatpush1.msra.mxu0 0.0
    %196 = vmatprep.subr.mxu0 0.0
    %197 = vmatpush1.msra.mxu0 0.0
    %198 = vmatprep.subr.mxu0 0.0
    %199 = vmatpush1.msra.mxu0 0.0
    %200 = vmatprep.subr.mxu0 0.0
    %201 = vmatpush1.msra.mxu0 0.0
    %202 = vmatprep.subr.mxu0 0.0
    %203 = vmatpush1.msra.mxu0 0.0
    %204 = vmatprep.subr.mxu0 0.0
    %205 = vmatpush1.msra.mxu0 0.0
    %206 = vmatprep.subr.mxu0 0.0
    %207 = vmatpush1.msra.mxu0 0.0
    %208 = vmatprep.subr.mxu0 0.0
    %209 = vmatpush1.msra.mxu0 0.0
    %210 = vmatprep.subr.mxu0 0.0
    %211 = vmatpush1.msra.mxu0 0.0
    %212 = vmatprep.subr.mxu0 0.0
    %213 = vmatpush1.msra.mxu0 0.0
    %214 = vmatprep.subr.mxu0 0.0
    %215 = vmatpush1.msra.mxu0 0.0
    %216 = vmatprep.subr.mxu0 0.0
    %217 = vmatpush1.msra.mxu0 0.0
    %218 = vmatprep.subr.mxu0 0.0
    %219 = vmatpush1.msra.mxu0 0.0
    %220 = vmatprep.subr.mxu0 0.0
    %221 = vmatpush1.msra.mxu0 %v28
    %222 = vmatprep.subr.mxu0 0.0
    %223 = vmatpush2.msra.mxu0 0.0
    %224 = vmatprep.subr.mxu0 0.0
    %225 = vmatpush2.msra.mxu0 0.0
    %226 = vmatprep.subr.mxu0 0.0
    %227 = vmatpush2.msra.mxu0 0.0
    %228 = vmatprep.subr.mxu0 0.0
    %229 = vmatpush2.msra.mxu0 0.0
    %230 = vmatprep.subr.mxu0 0.0
    %231 = vmatpush2.msra.mxu0 0.0
    %232 = vmatprep.subr.mxu0 0.0
    %233 = vmatpush2.msra.mxu0 0.0
    %234 = vmatprep.subr.mxu0 0.0
    %235 = vmatpush2.msra.mxu0 0.0
    %236 = vmatprep.subr.mxu0 0.0
    %237 = vmatpush2.msra.mxu0 0.0
    %238 = vmatprep.subr.mxu0 0.0
    %239 = vmatpush2.msra.mxu0 0.0
    %240 = vmatprep.subr.mxu0 0.0
    %241 = vmatpush2.msra.mxu0 0.0
    %242 = vmatprep.subr.mxu0 0.0
    %243 = vmatpush2.msra.mxu0 0.0
    %244 = vmatprep.subr.mxu0 0.0
    %245 = vmatpush2.msra.mxu0 0.0
    %246 = vmatprep.subr.mxu0 0.0
    %247 = vmatpush2.msra.mxu0 0.0
    %248 = vmatprep.subr.mxu0 0.0
    %249 = vmatpush2.msra.mxu0 0.0
    %250 = vmatprep.subr.mxu0 0.0
    %251 = vmatpush2.msra.mxu0 0.0
    %252 = vmatprep.subr.mxu0 0.0
    %253 = vmatpush2.msra.mxu0 0.0
    %254 = vmatprep.mubr.f32.mxu0 0.0
    %255 = vmatmul.mubr.f32.gmra.mxu0 %v143
    %v256 = vpop.f32.mrf.mxu0
    %v257 = vadd.f32 %v64, %v256
    %v258 = vpop.f32.mrf.mxu0
    %259 = vmatprep.mubr.f32.mxu0 0.0
    %260 = vmatmul.mubr.f32.gmra.mxu0 %v146
    %v261 = vpop.f32.mrf.mxu0
    %v262 = vadd.f32 %v69, %v261
    %v263 = vpop.f32.mrf.mxu0
    %264 = vmatprep.mubr.f32.mxu0 0.0
    %265 = vmatmul.mubr.f32.gmra.mxu0 %v149
    %v266 = vpop.f32.mrf.mxu0
    %v267 = vadd.f32 %v74, %v266
    %v268 = vpop.f32.mrf.mxu0
    %269 = vmatprep.mubr.f32.mxu0 0.0
    %270 = vmatmul.mubr.f32.gmra.mxu0 %v152
    %v271 = vpop.f32.mrf.mxu0
    %v272 = vadd.f32 %v79, %v271
    %v273 = vpop.f32.mrf.mxu0
    %274 = vmatprep.mubr.f32.mxu0 0.0
    %275 = vmatmul.mubr.f32.gmra.mxu0 %v155
    %v276 = vpop.f32.mrf.mxu0
    %v277 = vadd.f32 %v84, %v276
    %v278 = vpop.f32.mrf.mxu0
    %279 = vmatprep.mubr.f32.mxu0 0.0
    %280 = vmatmul.mubr.f32.gmra.mxu0 %v158
    %v281 = vpop.f32.mrf.mxu0
    %v282 = vadd.f32 %v89, %v281
    %v283 = vpop.f32.mrf.mxu0
    %284 = vmatprep.mubr.f32.mxu0 0.0
    %285 = vmatmul.mubr.f32.gmra.mxu0 %v161
    %v286 = vpop.f32.mrf.mxu0
    %v287 = vadd.f32 %v94, %v286
    %v288 = vpop.f32.mrf.mxu0
    %289 = vmatprep.mubr.f32.mxu0 0.0
    %290 = vmatmul.mubr.f32.gmra.mxu0 %v164
    %v291 = vpop.f32.mrf.mxu0
    %v292 = vadd.f32 %v99, %v291
    %v293 = vpop.f32.mrf.mxu0
    %294 = vmatprep.mubr.f32.mxu0 0.0
    %295 = vmatmul.mubr.f32.gmra.mxu0 %v167
    %v296 = vpop.f32.mrf.mxu0
    %v297 = vadd.f32 %v104, %v296
    %v298 = vpop.f32.mrf.mxu0
    %299 = vmatprep.mubr.f32.mxu0 0.0
    %300 = vmatmul.mubr.f32.gmra.mxu0 %v170
    %v301 = vpop.f32.mrf.mxu0
    %v302 = vadd.f32 %v109, %v301
    %v303 = vpop.f32.mrf.mxu0
    %304 = vmatprep.mubr.f32.mxu0 0.0
    %305 = vmatmul.mubr.f32.gmra.mxu0 %v173
    %v306 = vpop.f32.mrf.mxu0
    %v307 = vadd.f32 %v114, %v306
    %v308 = vpop.f32.mrf.mxu0
    %309 = vmatprep.mubr.f32.mxu0 0.0
    %310 = vmatmul.mubr.f32.gmra.mxu0 %v176
    %v311 = vpop.f32.mrf.mxu0
    %v312 = vadd.f32 %v119, %v311
    %v313 = vpop.f32.mrf.mxu0
    %314 = vmatprep.mubr.f32.mxu0 0.0
    %315 = vmatmul.mubr.f32.gmra.mxu0 %v179
    %v316 = vpop.f32.mrf.mxu0
    %v317 = vadd.f32 %v124, %v316
    %v318 = vpop.f32.mrf.mxu0
    %319 = vmatprep.mubr.f32.mxu0 0.0
    %320 = vmatmul.mubr.f32.gmra.mxu0 %v182
    %v321 = vpop.f32.mrf.mxu0
    %v322 = vadd.f32 %v129, %v321
    %v323 = vpop.f32.mrf.mxu0
    %324 = vmatprep.mubr.f32.mxu0 0.0
    %325 = vmatmul.mubr.f32.gmra.mxu0 %v185
    %v326 = vpop.f32.mrf.mxu0
    %v327 = vadd.f32 %v134, %v326
    %v328 = vpop.f32.mrf.mxu0
    %329 = vmatprep.mubr.f32.mxu0 0.0
    %330 = vmatmul.mubr.f32.gmra.mxu0 %v188
    %v331 = vpop.f32.mrf.mxu0
    %v332 = vadd.f32 %v139, %v331
    %v333 = vpop.f32.mrf.mxu0
    %334 = vdwg.mxu0
    %v335 = vmax.f32 %v257, 0.0
    %v336 = vmax.f32 %v262, 0.0
    %v337 = vmax.f32 %v267, 0.0
    %v338 = vmax.f32 %v272, 0.0
    %v339 = vmax.f32 %v277, 0.0
    %v340 = vmax.f32 %v282, 0.0
    %v341 = vmax.f32 %v287, 0.0
    %v342 = vmax.f32 %v292, 0.0
    %v343 = vmax.f32 %v297, 0.0
    %v344 = vmax.f32 %v302, 0.0
    %v345 = vmax.f32 %v307, 0.0
    %v346 = vmax.f32 %v312, 0.0
    %v347 = vmax.f32 %v317, 0.0
    %v348 = vmax.f32 %v322, 0.0
    %v349 = vmax.f32 %v327, 0.0
    %v350 = vmax.f32 %v332, 0.0
    %v351 = vld [vmem:[%s3] sm:$0xff]
    %v352 = vld [vmem:[%s3 + $0x8] sm:$0xff]
    %v353 = vld [vmem:[%s3 + $0x10] sm:$0xff]
    %v354 = vld [vmem:[%s3 + $0x18] sm:$0xff]
    %v355 = vld [vmem:[%s3 + $0x20] sm:$0xff]
    %v356 = vld [vmem:[%s3 + $0x28] sm:$0xff]
    %v357 = vld [vmem:[%s3 + $0x30] sm:$0xff]
    %v358 = vld [vmem:[%s3 + $0x38] sm:$0xff]
    %v359 = vld [vmem:[%s3 + $0x40] sm:$0xff]
    %v360 = vld [vmem:[%s3 + $0x48] sm:$0xff]
    %v361 = vld [vmem:[%s3 + $0x50] sm:$0xff]
    %v362 = vld [vmem:[%s3 + $0x58] sm:$0xff]
    %v363 = vld [vmem:[%s3 + $0x60] sm:$0xff]
    %v364 = vld [vmem:[%s3 + $0x68] sm:$0xff]
    %v365 = vld [vmem:[%s3 + $0x70] sm:$0xff]
    %v366 = vld [vmem:[%s3 + $0x78] sm:$0xff]
    %v367 = vld [vmem:[%s3 + $0x80] sm:$0xff]
    %v368 = vld [vmem:[%s3 + $0x88] sm:$0xff]
    %v369 = vld [vmem:[%s3 + $0x90] sm:$0xff]
    %v370 = vld [vmem:[%s3 + $0x98] sm:$0xff]
    %v371 = vld [vmem:[%s3 + $0xa0] sm:$0xff]
    %v372 = vld [vmem:[%s3 + $0xa8] sm:$0xff]
    %v373 = vld [vmem:[%s3 + $0xb0] sm:$0xff]
    %v374 = vld [vmem:[%s3 + $0xb8] sm:$0xff]
    %v375 = vld [vmem:[%s3 + $0xc0] sm:$0xff]
    %v376 = vld [vmem:[%s3 + $0xc8] sm:$0xff]
    %v377 = vld [vmem:[%s3 + $0xd0] sm:$0xff]
    %v378 = vld [vmem:[%s3 + $0xd8] sm:$0xff]
    %v379 = vld [vmem:[%s3 + $0xe0] sm:$0xff]
    %v380 = vld [vmem:[%s3 + $0xe8] sm:$0xff]
    %v381 = vld [vmem:[%s3 + $0xf0] sm:$0xff]
    %v382 = vld [vmem:[%s3 + $0xf8] sm:$0xff]
    %v383 = vld [vmem:[%s4] sm:$0xff]
    %v384 = vld [vmem:[%s4 + $0x8] sm:$0xff]
    %v385 = vld [vmem:[%s4 + $0x10] sm:$0xff]
    %v386 = vld [vmem:[%s4 + $0x18] sm:$0xff]
    %v387 = vld [vmem:[%s4 + $0x20] sm:$0xff]
    %v388 = vld [vmem:[%s4 + $0x28] sm:$0xff]
    %v389 = vld [vmem:[%s4 + $0x30] sm:$0xff]
    %v390 = vld [vmem:[%s4 + $0x38] sm:$0xff]
    %v391 = vld [vmem:[%s4 + $0x40] sm:$0xff]
    %v392 = vld [vmem:[%s4 + $0x48] sm:$0xff]
    %v393 = vld [vmem:[%s4 + $0x50] sm:$0xff]
    %v394 = vld [vmem:[%s4 + $0x58] sm:$0xff]
    %v395 = vld [vmem:[%s4 + $0x60] sm:$0xff]
    %v396 = vld [vmem:[%s4 + $0x68] sm:$0xff]
    %v397 = vld [vmem:[%s4 + $0x70] sm:$0xff]
    %v398 = vld [vmem:[%s4 + $0x78] sm:$0xff]
    %v399 = vld [vmem:[%s4 + $0x80] sm:$0xff]
    %v400 = vld [vmem:[%s4 + $0x88] sm:$0xff]
    %v401 = vld [vmem:[%s4 + $0x90] sm:$0xff]
    %v402 = vld [vmem:[%s4 + $0x98] sm:$0xff]
    %v403 = vld [vmem:[%s4 + $0xa0] sm:$0xff]
    %v404 = vld [vmem:[%s4 + $0xa8] sm:$0xff]
    %v405 = vld [vmem:[%s4 + $0xb0] sm:$0xff]
    %v406 = vld [vmem:[%s4 + $0xb8] sm:$0xff]
    %v407 = vld [vmem:[%s4 + $0xc0] sm:$0xff]
    %v408 = vld [vmem:[%s4 + $0xc8] sm:$0xff]
    %v409 = vld [vmem:[%s4 + $0xd0] sm:$0xff]
    %v410 = vld [vmem:[%s4 + $0xd8] sm:$0xff]
    %v411 = vld [vmem:[%s4 + $0xe0] sm:$0xff]
    %v412 = vld [vmem:[%s4 + $0xe8] sm:$0xff]
    %v413 = vld [vmem:[%s4 + $0xf0] sm:$0xff]
    %v414 = vld [vmem:[%s4 + $0xf8] sm:$0xff]
    %416 = vset.pattern.permute.xlu0 0
    %417 = vperm.xlu0 %416, %v383
    %v418 = vpop.permute.xlu0 %417
    %421 = vset.pattern.permute.xlu0 0
    %422 = vperm.xlu0 %421, %v384
    %v423 = vpop.permute.xlu0 %422
    %426 = vset.pattern.permute.xlu0 0
    %427 = vperm.xlu0 %426, %v385
    %v428 = vpop.permute.xlu0 %427
    %431 = vset.pattern.permute.xlu0 0
    %432 = vperm.xlu0 %431, %v386
    %v433 = vpop.permute.xlu0 %432
    %436 = vset.pattern.permute.xlu0 0
    %437 = vperm.xlu0 %436, %v387
    %v438 = vpop.permute.xlu0 %437
    %441 = vset.pattern.permute.xlu0 0
    %442 = vperm.xlu0 %441, %v388
    %v443 = vpop.permute.xlu0 %442
    %446 = vset.pattern.permute.xlu0 0
    %447 = vperm.xlu0 %446, %v389
    %v448 = vpop.permute.xlu0 %447
    %451 = vset.pattern.permute.xlu0 0
    %452 = vperm.xlu0 %451, %v390
    %v453 = vpop.permute.xlu0 %452
    %456 = vset.pattern.permute.xlu0 0
    %457 = vperm.xlu0 %456, %v391
    %v458 = vpop.permute.xlu0 %457
    %461 = vset.pattern.permute.xlu0 0
    %462 = vperm.xlu0 %461, %v392
    %v463 = vpop.permute.xlu0 %462
    %466 = vset.pattern.permute.xlu0 0
    %467 = vperm.xlu0 %466, %v393
    %v468 = vpop.permute.xlu0 %467
    %471 = vset.pattern.permute.xlu0 0
    %472 = vperm.xlu0 %471, %v394
    %v473 = vpop.permute.xlu0 %472
    %476 = vset.pattern.permute.xlu0 0
    %477 = vperm.xlu0 %476, %v395
    %v478 = vpop.permute.xlu0 %477
    %481 = vset.pattern.permute.xlu0 0
    %482 = vperm.xlu0 %481, %v396
    %v483 = vpop.permute.xlu0 %482
    %486 = vset.pattern.permute.xlu0 0
    %487 = vperm.xlu0 %486, %v397
    %v488 = vpop.permute.xlu0 %487
    %491 = vset.pattern.permute.xlu0 0
    %492 = vperm.xlu0 %491, %v398
    %v493 = vpop.permute.xlu0 %492
    %496 = vset.pattern.permute.xlu0 0
    %497 = vperm.xlu0 %496, %v399
    %v498 = vpop.permute.xlu0 %497
    %501 = vset.pattern.permute.xlu0 0
    %502 = vperm.xlu0 %501, %v400
    %v503 = vpop.permute.xlu0 %502
    %506 = vset.pattern.permute.xlu0 0
    %507 = vperm.xlu0 %506, %v401
    %v508 = vpop.permute.xlu0 %507
    %511 = vset.pattern.permute.xlu0 0
    %512 = vperm.xlu0 %511, %v402
    %v513 = vpop.permute.xlu0 %512
    %516 = vset.pattern.permute.xlu0 0
    %517 = vperm.xlu0 %516, %v403
    %v518 = vpop.permute.xlu0 %517
    %521 = vset.pattern.permute.xlu0 0
    %522 = vperm.xlu0 %521, %v404
    %v523 = vpop.permute.xlu0 %522
    %526 = vset.pattern.permute.xlu0 0
    %527 = vperm.xlu0 %526, %v405
    %v528 = vpop.permute.xlu0 %527
    %531 = vset.pattern.permute.xlu0 0
    %532 = vperm.xlu0 %531, %v406
    %v533 = vpop.permute.xlu0 %532
    %536 = vset.pattern.permute.xlu0 0
    %537 = vperm.xlu0 %536, %v407
    %v538 = vpop.permute.xlu0 %537
    %541 = vset.pattern.permute.xlu0 0
    %542 = vperm.xlu0 %541, %v408
    %v543 = vpop.permute.xlu0 %542
    %546 = vset.pattern.permute.xlu0 0
    %547 = vperm.xlu0 %546, %v409
    %v548 = vpop.permute.xlu0 %547
    %551 = vset.pattern.permute.xlu0 0
    %552 = vperm.xlu0 %551, %v410
    %v553 = vpop.permute.xlu0 %552
    %556 = vset.pattern.permute.xlu0 0
    %557 = vperm.xlu0 %556, %v411
    %v558 = vpop.permute.xlu0 %557
    %561 = vset.pattern.permute.xlu0 0
    %562 = vperm.xlu0 %561, %v412
    %v563 = vpop.permute.xlu0 %562
    %566 = vset.pattern.permute.xlu0 0
    %567 = vperm.xlu0 %566, %v413
    %v568 = vpop.permute.xlu0 %567
    %571 = vset.pattern.permute.xlu0 0
    %572 = vperm.xlu0 %571, %v414
    %v573 = vpop.permute.xlu0 %572
    %575 = vmatprep.subr.mxu0 0.0
    %576 = vmatpush1.msra.mxu0 %v350
    %577 = vmatprep.subr.mxu0 0.0
    %578 = vmatpush1.msra.mxu0 %v349
    %579 = vmatprep.subr.mxu0 0.0
    %580 = vmatpush1.msra.mxu0 %v348
    %581 = vmatprep.subr.mxu0 0.0
    %582 = vmatpush1.msra.mxu0 %v347
    %583 = vmatprep.subr.mxu0 0.0
    %584 = vmatpush1.msra.mxu0 %v346
    %585 = vmatprep.subr.mxu0 0.0
    %586 = vmatpush1.msra.mxu0 %v345
    %587 = vmatprep.subr.mxu0 0.0
    %588 = vmatpush1.msra.mxu0 %v344
    %589 = vmatprep.subr.mxu0 0.0
    %590 = vmatpush1.msra.mxu0 %v343
    %591 = vmatprep.subr.mxu0 0.0
    %592 = vmatpush1.msra.mxu0 %v342
    %593 = vmatprep.subr.mxu0 0.0
    %594 = vmatpush1.msra.mxu0 %v341
    %595 = vmatprep.subr.mxu0 0.0
    %596 = vmatpush1.msra.mxu0 %v340
    %597 = vmatprep.subr.mxu0 0.0
    %598 = vmatpush1.msra.mxu0 %v339
    %599 = vmatprep.subr.mxu0 0.0
    %600 = vmatpush1.msra.mxu0 %v338
    %601 = vmatprep.subr.mxu0 0.0
    %602 = vmatpush1.msra.mxu0 %v337
    %603 = vmatprep.subr.mxu0 0.0
    %604 = vmatpush1.msra.mxu0 %v336
    %605 = vmatprep.subr.mxu0 0.0
    %606 = vmatpush1.msra.mxu0 %v335
    %607 = vmatprep.subr.mxu0 0.0
    %608 = vmatpush2.msra.mxu0 0.0
    %609 = vmatprep.subr.mxu0 0.0
    %610 = vmatpush2.msra.mxu0 0.0
    %611 = vmatprep.subr.mxu0 0.0
    %612 = vmatpush2.msra.mxu0 0.0
    %613 = vmatprep.subr.mxu0 0.0
    %614 = vmatpush2.msra.mxu0 0.0
    %615 = vmatprep.subr.mxu0 0.0
    %616 = vmatpush2.msra.mxu0 0.0
    %617 = vmatprep.subr.mxu0 0.0
    %618 = vmatpush2.msra.mxu0 0.0
    %619 = vmatprep.subr.mxu0 0.0
    %620 = vmatpush2.msra.mxu0 0.0
    %621 = vmatprep.subr.mxu0 0.0
    %622 = vmatpush2.msra.mxu0 0.0
    %623 = vmatprep.subr.mxu0 0.0
    %624 = vmatpush2.msra.mxu0 0.0
    %625 = vmatprep.subr.mxu0 0.0
    %626 = vmatpush2.msra.mxu0 0.0
    %627 = vmatprep.subr.mxu0 0.0
    %628 = vmatpush2.msra.mxu0 0.0
    %629 = vmatprep.subr.mxu0 0.0
    %630 = vmatpush2.msra.mxu0 0.0
    %631 = vmatprep.subr.mxu0 0.0
    %632 = vmatpush2.msra.mxu0 0.0
    %633 = vmatprep.subr.mxu0 0.0
    %634 = vmatpush2.msra.mxu0 0.0
    %635 = vmatprep.subr.mxu0 0.0
    %636 = vmatpush2.msra.mxu0 0.0
    %637 = vmatprep.subr.mxu0 0.0
    %638 = vmatpush2.msra.mxu0 0.0
    %639 = vmatprep.mubr.f32.mxu0 0.0
    %640 = vmatmul.mubr.f32.gmra.mxu0 %v351
    %v641 = vpop.f32.mrf.mxu0
    %v642 = vadd.f32 %v418, %v641
    %v643 = vpop.f32.mrf.mxu0
    %644 = vmatprep.mubr.f32.mxu0 0.0
    %645 = vmatmul.mubr.f32.gmra.mxu0 %v352
    %v646 = vpop.f32.mrf.mxu0
    %v647 = vadd.f32 %v423, %v646
    %v648 = vpop.f32.mrf.mxu0
    %649 = vmatprep.mubr.f32.mxu0 0.0
    %650 = vmatmul.mubr.f32.gmra.mxu0 %v353
    %v651 = vpop.f32.mrf.mxu0
    %v652 = vadd.f32 %v428, %v651
    %v653 = vpop.f32.mrf.mxu0
    %654 = vmatprep.mubr.f32.mxu0 0.0
    %655 = vmatmul.mubr.f32.gmra.mxu0 %v354
    %v656 = vpop.f32.mrf.mxu0
    %v657 = vadd.f32 %v433, %v656
    %v658 = vpop.f32.mrf.mxu0
    %659 = vmatprep.mubr.f32.mxu0 0.0
    %660 = vmatmul.mubr.f32.gmra.mxu0 %v355
    %v661 = vpop.f32.mrf.mxu0
    %v662 = vadd.f32 %v438, %v661
    %v663 = vpop.f32.mrf.mxu0
    %664 = vmatprep.mubr.f32.mxu0 0.0
    %665 = vmatmul.mubr.f32.gmra.mxu0 %v356
    %v666 = vpop.f32.mrf.mxu0
    %v667 = vadd.f32 %v443, %v666
    %v668 = vpop.f32.mrf.mxu0
    %669 = vmatprep.mubr.f32.mxu0 0.0
    %670 = vmatmul.mubr.f32.gmra.mxu0 %v357
    %v671 = vpop.f32.mrf.mxu0
    %v672 = vadd.f32 %v448, %v671
    %v673 = vpop.f32.mrf.mxu0
    %674 = vmatprep.mubr.f32.mxu0 0.0
    %675 = vmatmul.mubr.f32.gmra.mxu0 %v358
    %v676 = vpop.f32.mrf.mxu0
    %v677 = vadd.f32 %v453, %v676
    %v678 = vpop.f32.mrf.mxu0
    %679 = vmatprep.mubr.f32.mxu0 0.0
    %680 = vmatmul.mubr.f32.gmra.mxu0 %v359
    %v681 = vpop.f32.mrf.mxu0
    %v682 = vadd.f32 %v458, %v681
    %v683 = vpop.f32.mrf.mxu0
    %684 = vmatprep.mubr.f32.mxu0 0.0
    %685 = vmatmul.mubr.f32.gmra.mxu0 %v360
    %v686 = vpop.f32.mrf.mxu0
    %v687 = vadd.f32 %v463, %v686
    %v688 = vpop.f32.mrf.mxu0
    %689 = vmatprep.mubr.f32.mxu0 0.0
    %690 = vmatmul.mubr.f32.gmra.mxu0 %v361
    %v691 = vpop.f32.mrf.mxu0
    %v692 = vadd.f32 %v468, %v691
    %v693 = vpop.f32.mrf.mxu0
    %694 = vmatprep.mubr.f32.mxu0 0.0
    %695 = vmatmul.mubr.f32.gmra.mxu0 %v362
    %v696 = vpop.f32.mrf.mxu0
    %v697 = vadd.f32 %v473, %v696
    %v698 = vpop.f32.mrf.mxu0
    %699 = vmatprep.mubr.f32.mxu0 0.0
    %700 = vmatmul.mubr.f32.gmra.mxu0 %v363
    %v701 = vpop.f32.mrf.mxu0
    %v702 = vadd.f32 %v478, %v701
    %v703 = vpop.f32.mrf.mxu0
    %704 = vmatprep.mubr.f32.mxu0 0.0
    %705 = vmatmul.mubr.f32.gmra.mxu0 %v364
    %v706 = vpop.f32.mrf.mxu0
    %v707 = vadd.f32 %v483, %v706
    %v708 = vpop.f32.mrf.mxu0
    %709 = vmatprep.mubr.f32.mxu0 0.0
    %710 = vmatmul.mubr.f32.gmra.mxu0 %v365
    %v711 = vpop.f32.mrf.mxu0
    %v712 = vadd.f32 %v488, %v711
    %v713 = vpop.f32.mrf.mxu0
    %714 = vmatprep.mubr.f32.mxu0 0.0
    %715 = vmatmul.mubr.f32.gmra.mxu0 %v366
    %v716 = vpop.f32.mrf.mxu0
    %v717 = vadd.f32 %v493, %v716
    %v718 = vpop.f32.mrf.mxu0
    %719 = vmatprep.mubr.f32.mxu0 0.0
    %720 = vmatmul.mubr.f32.gmra.mxu0 %v367
    %v721 = vpop.f32.mrf.mxu0
    %v722 = vadd.f32 %v498, %v721
    %v723 = vpop.f32.mrf.mxu0
    %724 = vmatprep.mubr.f32.mxu0 0.0
    %725 = vmatmul.mubr.f32.gmra.mxu0 %v368
    %v726 = vpop.f32.mrf.mxu0
    %v727 = vadd.f32 %v503, %v726
    %v728 = vpop.f32.mrf.mxu0
    %729 = vmatprep.mubr.f32.mxu0 0.0
    %730 = vmatmul.mubr.f32.gmra.mxu0 %v369
    %v731 = vpop.f32.mrf.mxu0
    %v732 = vadd.f32 %v508, %v731
    %v733 = vpop.f32.mrf.mxu0
    %734 = vmatprep.mubr.f32.mxu0 0.0
    %735 = vmatmul.mubr.f32.gmra.mxu0 %v370
    %v736 = vpop.f32.mrf.mxu0
    %v737 = vadd.f32 %v513, %v736
    %v738 = vpop.f32.mrf.mxu0
    %739 = vmatprep.mubr.f32.mxu0 0.0
    %740 = vmatmul.mubr.f32.gmra.mxu0 %v371
    %v741 = vpop.f32.mrf.mxu0
    %v742 = vadd.f32 %v518, %v741
    %v743 = vpop.f32.mrf.mxu0
    %744 = vmatprep.mubr.f32.mxu0 0.0
    %745 = vmatmul.mubr.f32.gmra.mxu0 %v372
    %v746 = vpop.f32.mrf.mxu0
    %v747 = vadd.f32 %v523, %v746
    %v748 = vpop.f32.mrf.mxu0
    %749 = vmatprep.mubr.f32.mxu0 0.0
    %750 = vmatmul.mubr.f32.gmra.mxu0 %v373
    %v751 = vpop.f32.mrf.mxu0
    %v752 = vadd.f32 %v528, %v751
    %v753 = vpop.f32.mrf.mxu0
    %754 = vmatprep.mubr.f32.mxu0 0.0
    %755 = vmatmul.mubr.f32.gmra.mxu0 %v374
    %v756 = vpop.f32.mrf.mxu0
    %v757 = vadd.f32 %v533, %v756
    %v758 = vpop.f32.mrf.mxu0
    %759 = vmatprep.mubr.f32.mxu0 0.0
    %760 = vmatmul.mubr.f32.gmra.mxu0 %v375
    %v761 = vpop.f32.mrf.mxu0
    %v762 = vadd.f32 %v538, %v761
    %v763 = vpop.f32.mrf.mxu0
    %764 = vmatprep.mubr.f32.mxu0 0.0
    %765 = vmatmul.mubr.f32.gmra.mxu0 %v376
    %v766 = vpop.f32.mrf.mxu0
    %v767 = vadd.f32 %v543, %v766
    %v768 = vpop.f32.mrf.mxu0
    %769 = vmatprep.mubr.f32.mxu0 0.0
    %770 = vmatmul.mubr.f32.gmra.mxu0 %v377
    %v771 = vpop.f32.mrf.mxu0
    %v772 = vadd.f32 %v548, %v771
    %v773 = vpop.f32.mrf.mxu0
    %774 = vmatprep.mubr.f32.mxu0 0.0
    %775 = vmatmul.mubr.f32.gmra.mxu0 %v378
    %v776 = vpop.f32.mrf.mxu0
    %v777 = vadd.f32 %v553, %v776
    %v778 = vpop.f32.mrf.mxu0
    %779 = vmatprep.mubr.f32.mxu0 0.0
    %780 = vmatmul.mubr.f32.gmra.mxu0 %v379
    %v781 = vpop.f32.mrf.mxu0
    %v782 = vadd.f32 %v558, %v781
    %v783 = vpop.f32.mrf.mxu0
    %784 = vmatprep.mubr.f32.mxu0 0.0
    %785 = vmatmul.mubr.f32.gmra.mxu0 %v380
    %v786 = vpop.f32.mrf.mxu0
    %v787 = vadd.f32 %v563, %v786
    %v788 = vpop.f32.mrf.mxu0
    %789 = vmatprep.mubr.f32.mxu0 0.0
    %790 = vmatmul.mubr.f32.gmra.mxu0 %v381
    %v791 = vpop.f32.mrf.mxu0
    %v792 = vadd.f32 %v568, %v791
    %v793 = vpop.f32.mrf.mxu0
    %794 = vmatprep.mubr.f32.mxu0 0.0
    %795 = vmatmul.mubr.f32.gmra.mxu0 %v382
    %v796 = vpop.f32.mrf.mxu0
    %v797 = vadd.f32 %v573, %v796
    %v798 = vpop.f32.mrf.mxu0
    %799 = vdwg.mxu0
    %v800 = vmax.f32 %v642, 0.0
    %v801 = vmax.f32 %v647, 0.0
    %v802 = vmax.f32 %v652, 0.0
    %v803 = vmax.f32 %v657, 0.0
    %v804 = vmax.f32 %v662, 0.0
    %v805 = vmax.f32 %v667, 0.0
    %v806 = vmax.f32 %v672, 0.0
    %v807 = vmax.f32 %v677, 0.0
    %v808 = vmax.f32 %v682, 0.0
    %v809 = vmax.f32 %v687, 0.0
    %v810 = vmax.f32 %v692, 0.0
    %v811 = vmax.f32 %v697, 0.0
    %v812 = vmax.f32 %v702, 0.0
    %v813 = vmax.f32 %v707, 0.0
    %v814 = vmax.f32 %v712, 0.0
    %v815 = vmax.f32 %v717, 0.0
    %v816 = vmax.f32 %v722, 0.0
    %v817 = vmax.f32 %v727, 0.0
    %v818 = vmax.f32 %v732, 0.0
    %v819 = vmax.f32 %v737, 0.0
    %v820 = vmax.f32 %v742, 0.0
    %v821 = vmax.f32 %v747, 0.0
    %v822 = vmax.f32 %v752, 0.0
    %v823 = vmax.f32 %v757, 0.0
    %v824 = vmax.f32 %v762, 0.0
    %v825 = vmax.f32 %v767, 0.0
    %v826 = vmax.f32 %v772, 0.0
    %v827 = vmax.f32 %v777, 0.0
    %v828 = vmax.f32 %v782, 0.0
    %v829 = vmax.f32 %v787, 0.0
    %v830 = vmax.f32 %v792, 0.0
    %v831 = vmax.f32 %v797, 0.0
    %v832 = vld [vmem:[%s5] sm:$0xff]
    %v833 = vld [vmem:[%s5 + $0x8] sm:$0xff]
    %v834 = vld [vmem:[%s5 + $0x10] sm:$0xff]
    %v835 = vld [vmem:[%s5 + $0x18] sm:$0xff]
    %v836 = vld [vmem:[%s5 + $0x20] sm:$0xff]
    %v837 = vld [vmem:[%s5 + $0x28] sm:$0xff]
    %v838 = vld [vmem:[%s5 + $0x30] sm:$0xff]
    %v839 = vld [vmem:[%s5 + $0x38] sm:$0xff]
    %v840 = vld [vmem:[%s5 + $0x40] sm:$0xff]
    %v841 = vld [vmem:[%s5 + $0x48] sm:$0xff]
    %v842 = vld [vmem:[%s5 + $0x50] sm:$0xff]
    %v843 = vld [vmem:[%s5 + $0x58] sm:$0xff]
    %v844 = vld [vmem:[%s5 + $0x60] sm:$0xff]
    %v845 = vld [vmem:[%s5 + $0x68] sm:$0xff]
    %v846 = vld [vmem:[%s5 + $0x70] sm:$0xff]
    %v847 = vld [vmem:[%s5 + $0x78] sm:$0xff]
    %v848 = vld [vmem:[%s5 + $0x80] sm:$0xff]
    %v849 = vld [vmem:[%s5 + $0x88] sm:$0xff]
    %v850 = vld [vmem:[%s5 + $0x90] sm:$0xff]
    %v851 = vld [vmem:[%s5 + $0x98] sm:$0xff]
    %v852 = vld [vmem:[%s5 + $0xa0] sm:$0xff]
    %v853 = vld [vmem:[%s5 + $0xa8] sm:$0xff]
    %v854 = vld [vmem:[%s5 + $0xb0] sm:$0xff]
    %v855 = vld [vmem:[%s5 + $0xb8] sm:$0xff]
    %v856 = vld [vmem:[%s5 + $0xc0] sm:$0xff]
    %v857 = vld [vmem:[%s5 + $0xc8] sm:$0xff]
    %v858 = vld [vmem:[%s5 + $0xd0] sm:$0xff]
    %v859 = vld [vmem:[%s5 + $0xd8] sm:$0xff]
    %v860 = vld [vmem:[%s5 + $0xe0] sm:$0xff]
    %v861 = vld [vmem:[%s5 + $0xe8] sm:$0xff]
    %v862 = vld [vmem:[%s5 + $0xf0] sm:$0xff]
    %v863 = vld [vmem:[%s5 + $0xf8] sm:$0xff]
    %865 = vset.pattern.permute.xlu0 0
    %866 = vperm.xlu0 %865, %v832
    %v867 = vpop.permute.xlu0 %866
    %870 = vset.pattern.permute.xlu0 0
    %871 = vperm.xlu0 %870, %v833
    %v872 = vpop.permute.xlu0 %871
    %875 = vset.pattern.permute.xlu0 0
    %876 = vperm.xlu0 %875, %v834
    %v877 = vpop.permute.xlu0 %876
    %880 = vset.pattern.permute.xlu0 0
    %881 = vperm.xlu0 %880, %v835
    %v882 = vpop.permute.xlu0 %881
    %885 = vset.pattern.permute.xlu0 0
    %886 = vperm.xlu0 %885, %v836
    %v887 = vpop.permute.xlu0 %886
    %890 = vset.pattern.permute.xlu0 0
    %891 = vperm.xlu0 %890, %v837
    %v892 = vpop.permute.xlu0 %891
    %895 = vset.pattern.permute.xlu0 0
    %896 = vperm.xlu0 %895, %v838
    %v897 = vpop.permute.xlu0 %896
    %900 = vset.pattern.permute.xlu0 0
    %901 = vperm.xlu0 %900, %v839
    %v902 = vpop.permute.xlu0 %901
    %905 = vset.pattern.permute.xlu0 0
    %906 = vperm.xlu0 %905, %v840
    %v907 = vpop.permute.xlu0 %906
    %910 = vset.pattern.permute.xlu0 0
    %911 = vperm.xlu0 %910, %v841
    %v912 = vpop.permute.xlu0 %911
    %915 = vset.pattern.permute.xlu0 0
    %916 = vperm.xlu0 %915, %v842
    %v917 = vpop.permute.xlu0 %916
    %920 = vset.pattern.permute.xlu0 0
    %921 = vperm.xlu0 %920, %v843
    %v922 = vpop.permute.xlu0 %921
    %925 = vset.pattern.permute.xlu0 0
    %926 = vperm.xlu0 %925, %v844
    %v927 = vpop.permute.xlu0 %926
    %930 = vset.pattern.permute.xlu0 0
    %931 = vperm.xlu0 %930, %v845
    %v932 = vpop.permute.xlu0 %931
    %935 = vset.pattern.permute.xlu0 0
    %936 = vperm.xlu0 %935, %v846
    %v937 = vpop.permute.xlu0 %936
    %940 = vset.pattern.permute.xlu0 0
    %941 = vperm.xlu0 %940, %v847
    %v942 = vpop.permute.xlu0 %941
    %945 = vset.pattern.permute.xlu0 0
    %946 = vperm.xlu0 %945, %v848
    %v947 = vpop.permute.xlu0 %946
    %950 = vset.pattern.permute.xlu0 0
    %951 = vperm.xlu0 %950, %v849
    %v952 = vpop.permute.xlu0 %951
    %955 = vset.pattern.permute.xlu0 0
    %956 = vperm.xlu0 %955, %v850
    %v957 = vpop.permute.xlu0 %956
    %960 = vset.pattern.permute.xlu0 0
    %961 = vperm.xlu0 %960, %v851
    %v962 = vpop.permute.xlu0 %961
    %965 = vset.pattern.permute.xlu0 0
    %966 = vperm.xlu0 %965, %v852
    %v967 = vpop.permute.xlu0 %966
    %970 = vset.pattern.permute.xlu0 0
    %971 = vperm.xlu0 %970, %v853
    %v972 = vpop.permute.xlu0 %971
    %975 = vset.pattern.permute.xlu0 0
    %976 = vperm.xlu0 %975, %v854
    %v977 = vpop.permute.xlu0 %976
    %980 = vset.pattern.permute.xlu0 0
    %981 = vperm.xlu0 %980, %v855
    %v982 = vpop.permute.xlu0 %981
    %985 = vset.pattern.permute.xlu0 0
    %986 = vperm.xlu0 %985, %v856
    %v987 = vpop.permute.xlu0 %986
    %990 = vset.pattern.permute.xlu0 0
    %991 = vperm.xlu0 %990, %v857
    %v992 = vpop.permute.xlu0 %991
    %995 = vset.pattern.permute.xlu0 0
    %996 = vperm.xlu0 %995, %v858
    %v997 = vpop.permute.xlu0 %996
    %1000 = vset.pattern.permute.xlu0 0
    %1001 = vperm.xlu0 %1000, %v859
    %v1002 = vpop.permute.xlu0 %1001
    %1005 = vset.pattern.permute.xlu0 0
    %1006 = vperm.xlu0 %1005, %v860
    %v1007 = vpop.permute.xlu0 %1006
    %1010 = vset.pattern.permute.xlu0 0
    %1011 = vperm.xlu0 %1010, %v861
    %v1012 = vpop.permute.xlu0 %1011
    %1015 = vset.pattern.permute.xlu0 0
    %1016 = vperm.xlu0 %1015, %v862
    %v1017 = vpop.permute.xlu0 %1016
    %1020 = vset.pattern.permute.xlu0 0
    %1021 = vperm.xlu0 %1020, %v863
    %v1022 = vpop.permute.xlu0 %1021
    %v1024 = vmul.f32 %v800, %v867
    %v1025 = vmul.f32 %v801, %v872
    %v1026 = vmul.f32 %v802, %v877
    %v1027 = vmul.f32 %v803, %v882
    %v1028 = vmul.f32 %v804, %v887
    %v1029 = vmul.f32 %v805, %v892
    %v1030 = vmul.f32 %v806, %v897
    %v1031 = vmul.f32 %v807, %v902
    %v1032 = vmul.f32 %v808, %v907
    %v1033 = vmul.f32 %v809, %v912
    %v1034 = vmul.f32 %v810, %v917
    %v1035 = vmul.f32 %v811, %v922
    %v1036 = vmul.f32 %v812, %v927
    %v1037 = vmul.f32 %v813, %v932
    %v1038 = vmul.f32 %v814, %v937
    %v1039 = vmul.f32 %v815, %v942
    %v1040 = vmul.f32 %v816, %v947
    %v1041 = vmul.f32 %v817, %v952
    %v1042 = vmul.f32 %v818, %v957
    %v1043 = vmul.f32 %v819, %v962
    %v1044 = vmul.f32 %v820, %v967
    %v1045 = vmul.f32 %v821, %v972
    %v1046 = vmul.f32 %v822, %v977
    %v1047 = vmul.f32 %v823, %v982
    %v1048 = vmul.f32 %v824, %v987
    %v1049 = vmul.f32 %v825, %v992
    %v1050 = vmul.f32 %v826, %v997
    %v1051 = vmul.f32 %v827, %v1002
    %v1052 = vmul.f32 %v828, %v1007
    %v1053 = vmul.f32 %v829, %v1012
    %v1054 = vmul.f32 %v830, %v1017
    %v1055 = vmul.f32 %v831, %v1022
    %v1056 = vadd.f32 %v1024, %v1025
    %v1057 = vadd.f32 %v1056, %v1026
    %v1058 = vadd.f32 %v1057, %v1027
    %v1059 = vadd.f32 %v1058, %v1028
    %v1060 = vadd.f32 %v1059, %v1029
    %v1061 = vadd.f32 %v1060, %v1030
    %v1062 = vadd.f32 %v1061, %v1031
    %v1063 = vadd.f32 %v1062, %v1032
    %v1064 = vadd.f32 %v1063, %v1033
    %v1065 = vadd.f32 %v1064, %v1034
    %v1066 = vadd.f32 %v1065, %v1035
    %v1067 = vadd.f32 %v1066, %v1036
    %v1068 = vadd.f32 %v1067, %v1037
    %v1069 = vadd.f32 %v1068, %v1038
    %v1070 = vadd.f32 %v1069, %v1039
    %v1071 = vadd.f32 %v1070, %v1040
    %v1072 = vadd.f32 %v1071, %v1041
    %v1073 = vadd.f32 %v1072, %v1042
    %v1074 = vadd.f32 %v1073, %v1043
    %v1075 = vadd.f32 %v1074, %v1044
    %v1076 = vadd.f32 %v1075, %v1045
    %v1077 = vadd.f32 %v1076, %v1046
    %v1078 = vadd.f32 %v1077, %v1047
    %v1079 = vadd.f32 %v1078, %v1048
    %v1080 = vadd.f32 %v1079, %v1049
    %v1081 = vadd.f32 %v1080, %v1050
    %v1082 = vadd.f32 %v1081, %v1051
    %v1083 = vadd.f32 %v1082, %v1052
    %v1084 = vadd.f32 %v1083, %v1053
    %v1085 = vadd.f32 %v1084, %v1054
    %v1086 = vadd.f32 %v1085, %v1055
    %v1087 = vrot.slane %v1086, 4
    %v1088 = vadd.f32 %v1086, %v1087
    %v1089 = vrot.slane %v1088, 2
    %v1090 = vadd.f32 %v1088, %v1089
    %v1091 = vrot.slane %v1090, 1
    %v1092 = vadd.f32 %v1090, %v1091
    %s1093 = sld [smem:[#allocation2]]
    %v1094 = vstv %s1093
    %v1095 = vadd.f32 %v1092, %v1094
    %1096 = vst [vmem:[#allocation3] sm:$0x1] %v1095
    // Predicated region
    $region30: #{tpu_custom_call.1} parent=1 // pred_check
      _
    $region31: #{tpu_custom_call.1} parent=1 // pred_check_branch
      %1098 = sbr.rel (0) target = $region33
    $region32: #{tpu_custom_call.1} parent=1 // pred_region
      %s1100 = ssub.s32 16, 16
      %1101 = vsyncadd [#allocation4], %s1100
      %s1103 = sshll.u32 [#allocation3], 4
      %s1104 = int_to_ptr.vmem [resolvable:$true] %s1103
      %1106 = dma.vmem_to_hbm [thread:$0]  %s1104, 16, %s7, [#allocation4]
    $region33: #{tpu_custom_call.1} parent=1 // pred_fallthru
      _
    // Predicated region
    $region34: #{tpu_custom_call.1} parent=1 // pred_check
      _
    $region35: #{tpu_custom_call.1} parent=1 // pred_check_branch
      %1108 = sbr.rel (0) target = $region37
    $region36: #{tpu_custom_call.1} parent=1 // pred_region
      %1109 = dma.done [#allocation4], 16
    $region37: #{tpu_custom_call.1} parent=1 // pred_fallthru
      _
    %1110 = vsyncpa [#allocation4], 1

</llo_original>
